<compile_context>
chip_gen: v7x
topology: tpu7x:2x2x1
jax: 0.10.0
libtpu: 0.0.40
codegen_flags: <defaults>
</compile_context>

<pallas_src>
import functools
import math

import jax
import jax.numpy as jnp
from jax.experimental import pallas as pl
from jax.experimental.pallas import tpu as pltpu

# ---- toy hyper-parameters (consistent with the module signature) ----
N_SEQ, N_RES = 4, 8
C_M, C_Z, C_S = 16, 8, 32
NUM_BLOCKS = 2
C_HID_MSA, N_HEAD_MSA = 16, 2      # MSA row/column attention per-head hidden / heads
C_OPM = 8                          # OuterProductMean hidden
C_TRI_MUL = 16                     # Triangle multiplication hidden
C_HID_TRI, N_HEAD_TRI = 16, 2      # Triangle attention per-head hidden / heads
TRANSITION_N = 4
LN_EPS = 1e-5

# Row tile for the row-gridded kernels.  Toy-sized here; at production use 512-2048
# rows (halve it on v7x, whose VMEM budget is 64 MiB instead of 128 MiB).
ROW_TILE = 16

_PARALLEL = pltpu.CompilerParams(dimension_semantics=("parallel",))


# ------------------------------ tiling helpers ------------------------------

def _row_tile(m):
    t = min(m, ROW_TILE)
    if t == m:
        return m
    while t >= 8:
        if m % t == 0 and t % 8 == 0:
            return t
        t -= 1
    return m


def _col_tile(m, target=512):
    # tile for blocks whose *last* dim is the flattened row index (128-multiples)
    if m <= 128 or m % 128 != 0:
        return m
    t = min(target, m) // 128 * 128
    while m % t != 0:
        t -= 128
    return t


def _batch_tile(b):
    # attention batch rows per grid step; keep grid extent >= 2 so both v7x
    # TensorCores get work, cap the tile so blocks stay VMEM-friendly at scale.
    t = min(b, 8)
    if b % 2 == 0 and b >= 4:
        t = min(t, b // 2)
    while b % t != 0:
        t -= 1
    return max(t, 1)


def _layer_norm(x, g, b):
    mu = jnp.mean(x, axis=-1, keepdims=True)
    var = jnp.mean(jnp.square(x - mu), axis=-1, keepdims=True)
    return (x - mu) * jax.lax.rsqrt(var + LN_EPS) * g + b


# --------------------- fused LayerNorm + Linear kernels ---------------------

def _ln_linear_kernel(x_ref, g_ref, b_ref, w_ref, wb_ref, o_ref):
    xln = _layer_norm(x_ref[...], g_ref[...], b_ref[...])
    o_ref[...] = jnp.dot(xln, w_ref[...], preferred_element_type=jnp.float32) + wb_ref[...]


def ln_linear(x, ln_p, lin_p):
    """LayerNorm(x) @ W + b, fused, row-tiled (used for the pair-bias projections)."""
    lead, k = x.shape[:-1], x.shape[-1]
    n = lin_p["w"].shape[-1]
    x2 = x.reshape(-1, k)
    m = x2.shape[0]
    tm = _row_tile(m)
    out = pl.pallas_call(
        _ln_linear_kernel,
        grid=(m // tm,),
        in_specs=[pl.BlockSpec((tm, k), lambda i: (i, 0)),
                  pl.BlockSpec((1, k), lambda i: (0, 0)),
                  pl.BlockSpec((1, k), lambda i: (0, 0)),
                  pl.BlockSpec((k, n), lambda i: (0, 0)),
                  pl.BlockSpec((1, n), lambda i: (0, 0))],
        out_specs=pl.BlockSpec((tm, n), lambda i: (i, 0)),
        out_shape=jax.ShapeDtypeStruct((m, n), jnp.float32),
        compiler_params=_PARALLEL,
    )(x2, ln_p["g"].reshape(1, k), ln_p["b"].reshape(1, k),
      lin_p["w"], lin_p["b"].reshape(1, n))
    return out.reshape(*lead, n)


def _ln_linear2_kernel(x_ref, g_ref, b_ref, w1_ref, b1_ref, w2_ref, b2_ref,
                       o1_ref, o2_ref):
    xln = _layer_norm(x_ref[...], g_ref[...], b_ref[...])
    o1_ref[...] = jnp.dot(xln, w1_ref[...], preferred_element_type=jnp.float32) + b1_ref[...]
    o2_ref[...] = jnp.dot(xln, w2_ref[...], preferred_element_type=jnp.float32) + b2_ref[...]


def ln_linear2(x, ln_p, lin1, lin2):
    """One LayerNorm feeding two linear projections (single read of x)."""
    lead, k = x.shape[:-1], x.shape[-1]
    n1, n2 = lin1["w"].shape[-1], lin2["w"].shape[-1]
    x2 = x.reshape(-1, k)
    m = x2.shape[0]
    tm = _row_tile(m)
    o1, o2 = pl.pallas_call(
        _ln_linear2_kernel,
        grid=(m // tm,),
        in_specs=[pl.BlockSpec((tm, k), lambda i: (i, 0)),
                  pl.BlockSpec((1, k), lambda i: (0, 0)),
                  pl.BlockSpec((1, k), lambda i: (0, 0)),
                  pl.BlockSpec((k, n1), lambda i: (0, 0)),
                  pl.BlockSpec((1, n1), lambda i: (0, 0)),
                  pl.BlockSpec((k, n2), lambda i: (0, 0)),
                  pl.BlockSpec((1, n2), lambda i: (0, 0))],
        out_specs=[pl.BlockSpec((tm, n1), lambda i: (i, 0)),
                   pl.BlockSpec((tm, n2), lambda i: (i, 0))],
        out_shape=(jax.ShapeDtypeStruct((m, n1), jnp.float32),
                   jax.ShapeDtypeStruct((m, n2), jnp.float32)),
        compiler_params=_PARALLEL,
    )(x2, ln_p["g"].reshape(1, k), ln_p["b"].reshape(1, k),
      lin1["w"], lin1["b"].reshape(1, n1), lin2["w"], lin2["b"].reshape(1, n2))
    return o1.reshape(*lead, n1), o2.reshape(*lead, n2)


def _linear_residual_kernel(x_ref, w_ref, b_ref, res_ref, o_ref):
    o_ref[...] = res_ref[...] + (
        jnp.dot(x_ref[...], w_ref[...], preferred_element_type=jnp.float32) + b_ref[...])


def linear_residual(x, lin_p, res):
    """res + x @ W + b (residual add folded into the projection kernel)."""
    lead, k = x.shape[:-1], x.shape[-1]
    n = lin_p["w"].shape[-1]
    x2 = x.reshape(-1, k)
    r2 = res.reshape(-1, n)
    m = x2.shape[0]
    tm = _row_tile(m)
    out = pl.pallas_call(
        _linear_residual_kernel,
        grid=(m // tm,),
        in_specs=[pl.BlockSpec((tm, k), lambda i: (i, 0)),
                  pl.BlockSpec((k, n), lambda i: (0, 0)),
                  pl.BlockSpec((1, n), lambda i: (0, 0)),
                  pl.BlockSpec((tm, n), lambda i: (i, 0))],
        out_specs=pl.BlockSpec((tm, n), lambda i: (i, 0)),
        out_shape=jax.ShapeDtypeStruct((m, n), jnp.float32),
        compiler_params=_PARALLEL,
    )(x2, lin_p["w"], lin_p["b"].reshape(1, n), r2)
    return out.reshape(*lead, n)


def _linear_kernel(x_ref, w_ref, b_ref, o_ref):
    o_ref[...] = jnp.dot(x_ref[...], w_ref[...], preferred_element_type=jnp.float32) + b_ref[...]


def linear_plain(x, lin_p):
    lead, k = x.shape[:-1], x.shape[-1]
    n = lin_p["w"].shape[-1]
    x2 = x.reshape(-1, k)
    m = x2.shape[0]
    tm = _row_tile(m)
    out = pl.pallas_call(
        _linear_kernel,
        grid=(m // tm,),
        in_specs=[pl.BlockSpec((tm, k), lambda i: (i, 0)),
                  pl.BlockSpec((k, n), lambda i: (0, 0)),
                  pl.BlockSpec((1, n), lambda i: (0, 0))],
        out_specs=pl.BlockSpec((tm, n), lambda i: (i, 0)),
        out_shape=jax.ShapeDtypeStruct((m, n), jnp.float32),
        compiler_params=_PARALLEL,
    )(x2, lin_p["w"], lin_p["b"].reshape(1, n))
    return out.reshape(*lead, n)


# ------------------------------- transition --------------------------------

def _transition_kernel(x_ref, g_ref, b_ref, w1_ref, b1_ref, w2_ref, b2_ref, o_ref):
    x = x_ref[...]
    h = jnp.dot(_layer_norm(x, g_ref[...], b_ref[...]), w1_ref[...],
                preferred_element_type=jnp.float32) + b1_ref[...]
    h = jnp.maximum(h, 0.0)
    o_ref[...] = x + (jnp.dot(h, w2_ref[...], preferred_element_type=jnp.float32) + b2_ref[...])


def transition(x, p):
    """x + Linear2(relu(Linear1(LayerNorm(x)))); LN, MLP and residual fused."""
    lead, c = x.shape[:-1], x.shape[-1]
    ch = p["l1"]["w"].shape[-1]
    x2 = x.reshape(-1, c)
    m = x2.shape[0]
    tm = _row_tile(m)
    out = pl.pallas_call(
        _transition_kernel,
        grid=(m // tm,),
        in_specs=[pl.BlockSpec((tm, c), lambda i: (i, 0)),
                  pl.BlockSpec((1, c), lambda i: (0, 0)),
                  pl.BlockSpec((1, c), lambda i: (0, 0)),
                  pl.BlockSpec((c, ch), lambda i: (0, 0)),
                  pl.BlockSpec((1, ch), lambda i: (0, 0)),
                  pl.BlockSpec((ch, c), lambda i: (0, 0)),
                  pl.BlockSpec((1, c), lambda i: (0, 0))],
        out_specs=pl.BlockSpec((tm, c), lambda i: (i, 0)),
        out_shape=jax.ShapeDtypeStruct((m, c), jnp.float32),
        compiler_params=_PARALLEL,
    )(x2, p["ln"]["g"].reshape(1, c), p["ln"]["b"].reshape(1, c),
      p["l1"]["w"], p["l1"]["b"].reshape(1, ch),
      p["l2"]["w"], p["l2"]["b"].reshape(1, c))
    return out.reshape(*lead, c)


# --------------- fully fused gated multi-head self-attention ----------------
# One kernel: LN + q|k|v|g projection + softmax(QK^T + bias)V + gate + output
# projection + residual.  Only plain 2-D matmuls inside (static per-batch loop),
# so nothing but proven Mosaic op shapes are emitted.

def _attn_body(x_ref, g_ref, b_ref, wq_ref, bq_ref, bias_ref, wo_ref, bo_ref,
               o_ref, n_heads, c, scale):
    x = x_ref[...]                                          # (BB, Natt, c_in)
    xln = _layer_norm(x, g_ref[...], b_ref[...])
    wq = wq_ref[...]
    bq = bq_ref[...]
    wo = wo_ref[...]
    bo = bo_ref[...]
    bb = x.shape[0]
    for bi in range(bb):                                    # static, small
        comb = jnp.dot(xln[bi], wq, preferred_element_type=jnp.float32) + bq  # (Natt, 4Hc)
        outs = []
        for h in range(n_heads):
            q = comb[:, h * c:(h + 1) * c]
            k = comb[:, (n_heads + h) * c:(n_heads + h + 1) * c]
            v = comb[:, (2 * n_heads + h) * c:(2 * n_heads + h + 1) * c]
            gt = comb[:, (3 * n_heads + h) * c:(3 * n_heads + h + 1) * c]
            s = jax.lax.dot_general(q, k, (((1,), (1,)), ((), ())),
                                    preferred_element_type=jnp.float32) * scale
            if bias_ref is not None:
                s = s + bias_ref[h]                          # (Natt, Natt) un-broadcast bias
            s = s - jnp.max(s, axis=-1, keepdims=True)
            p = jnp.exp(s)
            p = p * pl.reciprocal(jnp.sum(p, axis=-1, keepdims=True), approx=True)
            o_h = jnp.dot(p, v, preferred_element_type=jnp.float32)
            outs.append(jax.nn.sigmoid(gt) * o_h)
        o_cat = jnp.concatenate(outs, axis=-1)               # (Natt, H*c)
        o_ref[bi] = x[bi] + (jnp.dot(o_cat, wo, preferred_element_type=jnp.float32) + bo)


def _fused_attn_bias_kernel(x_ref, g_ref, b_ref, wq_ref, bq_ref, bias_ref,
                            wo_ref, bo_ref, o_ref, *, n_heads, c, scale):
    _attn_body(x_ref, g_ref, b_ref, wq_ref, bq_ref, bias_ref, wo_ref, bo_ref,
               o_ref, n_heads, c, scale)


def _fused_attn_nobias_kernel(x_ref, g_ref, b_ref, wq_ref, bq_ref,
                              wo_ref, bo_ref, o_ref, *, n_heads, c, scale):
    _attn_body(x_ref, g_ref, b_ref, wq_ref, bq_ref, None, wo_ref, bo_ref,
               o_ref, n_heads, c, scale)


def fused_gated_attention(x, bias, ln_p, qkvg_p, out_p, n_heads, c):
    """x + GatedAttention(LayerNorm(x)) fully fused.

    x:    (B, Natt, c_in) attention batch / attended axis / channels.
    bias: (H, Natt, Natt) un-broadcast pair bias or None (compile-time no-bias path).
    """
    b, n, c_in = x.shape
    hc4 = qkvg_p["w"].shape[-1]
    bb = _batch_tile(b)
    scale = 1.0 / math.sqrt(c)

    x_spec = pl.BlockSpec((bb, n, c_in), lambda i: (i, 0, 0))
    head_specs = [
        x_spec,
        pl.BlockSpec((1, c_in), lambda i: (0, 0)),
        pl.BlockSpec((1, c_in), lambda i: (0, 0)),
        pl.BlockSpec((c_in, hc4), lambda i: (0, 0)),
        pl.BlockSpec((1, hc4), lambda i: (0, 0)),
    ]
    tail_specs = [
        pl.BlockSpec((n_heads * c, c_in), lambda i: (0, 0)),
        pl.BlockSpec((1, c_in), lambda i: (0, 0)),
    ]
    head_args = [x, ln_p["g"].reshape(1, c_in), ln_p["b"].reshape(1, c_in),
                 qkvg_p["w"], qkvg_p["b"].reshape(1, hc4)]
    tail_args = [out_p["w"], out_p["b"].reshape(1, c_in)]

    if bias is None:
        kern = functools.partial(_fused_attn_nobias_kernel, n_heads=n_heads, c=c, scale=scale)
        in_specs = head_specs + tail_specs
        args = head_args + tail_args
    else:
        kern = functools.partial(_fused_attn_bias_kernel, n_heads=n_heads, c=c, scale=scale)
        in_specs = head_specs + [pl.BlockSpec((n_heads, n, n), lambda i: (0, 0, 0))] + tail_specs
        args = head_args + [bias] + tail_args

    return pl.pallas_call(
        kern,
        grid=(b // bb,),
        in_specs=in_specs,
        out_specs=x_spec,
        out_shape=jax.ShapeDtypeStruct((b, n, c_in), jnp.float32),
        compiler_params=_PARALLEL,
    )(*args)


# ------------------------------ MSA attentions ------------------------------

def msa_row_attention_with_pair_bias(m, z, p):
    """m + MSARowAttentionWithPairBias(m, z) (everything but the bias projection fused)."""
    bias = ln_linear(z, p["ln_z"], p["bias"])               # (N, N, H), LN fused
    bias = jnp.transpose(bias, (2, 0, 1))                   # (H, N, N) -- small, un-broadcast
    return fused_gated_attention(m, bias, p["ln_m"], p["qkvg"], p["o"],
                                 N_HEAD_MSA, C_HID_MSA)


def msa_column_attention(m, p):
    """m + MSAColumnAttention(m) (single fused attention kernel)."""
    # TODO(synk): express the column-attention layout via the BlockSpec instead of a
    #             host transpose once non-minor-axis attention batching is validated.
    mt = jnp.transpose(m, (1, 0, 2))                        # attend over N_seq
    mt_new = fused_gated_attention(mt, None, p["ln"], p["qkvg"], p["o"],
                                   N_HEAD_MSA, C_HID_MSA)
    return jnp.transpose(mt_new, (1, 0, 2))


# ---------------------------- outer product mean ----------------------------

def _outer_mean_kernel(a_ref, b_ref, o_ref, *, inv_s):
    # a: (S, TI*c) column block of flattened a-projection; b: (S, N*c) full.
    # out[(i,x), (j,y)] = mean_s a[s,i,x] * b[s,j,y]
    o_ref[...] = jax.lax.dot_general(
        a_ref[...], b_ref[...], (((0,), (0,)), ((), ())),
        preferred_element_type=jnp.float32) * inv_s


def outer_product_mean(m, z, p):
    """z + Linear(flatten(mean_s outer(a, b))) with fused LN+projections and a
    fused output projection + residual kernel."""
    a, b = ln_linear2(m, p["ln"], p["l1"], p["l2"])         # each (S, N, c)
    s, n, c = a.shape
    a2, b2 = a.reshape(s, n * c), b.reshape(s, n * c)
    ti = n if (n * c) % 128 != 0 else max(1, 128 // c)
    outer = pl.pallas_call(
        functools.partial(_outer_mean_kernel, inv_s=1.0 / s),
        grid=(n // ti,),
        in_specs=[pl.BlockSpec((s, ti * c), lambda i: (0, i)),
                  pl.BlockSpec((s, n * c), lambda i: (0, 0))],
        out_specs=pl.BlockSpec((ti * c, n * c), lambda i: (i, 0)),
        out_shape=jax.ShapeDtypeStruct((n * c, n * c), jnp.float32),
        compiler_params=_PARALLEL,
    )(a2, b2)
    # reorder (i,x,j,y) -> (i,j,(x,y)).
    # TODO(synk): fold this reorder + the output projection into the outer-product
    #             kernel once in-kernel minor-dim reshapes are safe on all gens.
    feat = outer.reshape(n, c, n, c).transpose(0, 2, 1, 3).reshape(n, n, c * c)
    return linear_residual(feat, p["out"], res=z)           # projection + residual fused


# -------------------------- triangle multiplication -------------------------

def _tri_in_kernel(x_ref, g_ref, b_ref, wpt_ref, bp_ref, wg_ref, bg_ref,
                   proj_ref, gate_ref):
    # x: (TM, c_z); wpt: (4*c_t, c_z) transposed concat [a_p|a_g|b_p|b_g] weights.
    # proj: (4*c_t, TM) channel-major output; gate: (TM, c_z) row-major sigmoid gate.
    xln = _layer_norm(x_ref[...], g_ref[...], b_ref[...])
    proj_ref[...] = jax.lax.dot_general(
        wpt_ref[...], xln, (((1,), (1,)), ((), ())),
        preferred_element_type=jnp.float32) + bp_ref[...]
    gate_ref[...] = jax.nn.sigmoid(
        jnp.dot(xln, wg_ref[...], preferred_element_type=jnp.float32) + bg_ref[...])


def _tri_mult_kernel(ap_ref, ag_ref, bp_ref, bg_ref, o_ref, *, incoming):
    # channel-major blocks (1, CB, N, N); CB channels contracted per grid step.
    a = jax.nn.sigmoid(ag_ref[0]) * ap_ref[0]               # (CB, N, N)
    b = jax.nn.sigmoid(bg_ref[0]) * bp_ref[0]
    if incoming:   # out_ij = sum_k a_ki * b_kj
        o_ref[...] = jnp.einsum("cki,ckj->cij", a, b, preferred_element_type=jnp.float32)
    else:          # out_ij = sum_k a_ik * b_jk
        o_ref[...] = jnp.einsum("cik,cjk->cij", a, b, preferred_element_type=jnp.float32)


def _tri_out_kernel(t_ref, g_ref, b_ref, wz_ref, bz_ref, gate_ref, zres_ref, o_ref):
    # t: (c_t, TCOL) channel-major.  LayerNorm over channels + projection + gate + residual.
    t = t_ref[...]
    mu = jnp.mean(t, axis=0, keepdims=True)
    var = jnp.mean(jnp.square(t - mu), axis=0, keepdims=True)
    tln = (t - mu) * jax.lax.rsqrt(var + LN_EPS) * g_ref[...] + b_ref[...]
    proj = jax.lax.dot_general(tln, wz_ref[...], (((0,), (0,)), ((), ())),
                               preferred_element_type=jnp.float32) + bz_ref[...]
    o_ref[...] = zres_ref[...] + gate_ref[...] * proj


def triangle_multiplication(z, p, incoming):
    """z + TriangleMultiplication(z) (gate and residual folded in)."""
    n, c_z = z.shape[0], z.shape[-1]
    c_t = p["ln_out"]["g"].shape[0]
    m = n * n
    z2 = z.reshape(m, c_z)
    tc = _col_tile(m)

    # (1) fused LN + all five projections; a_p/a_g/b_p/b_g written channel-major
    proj_cf, gate = pl.pallas_call(
        _tri_in_kernel,
        grid=(m // tc,),
        in_specs=[pl.BlockSpec((tc, c_z), lambda i: (i, 0)),
                  pl.BlockSpec((1, c_z), lambda i: (0, 0)),
                  pl.BlockSpec((1, c_z), lambda i: (0, 0)),
                  pl.BlockSpec((4 * c_t, c_z), lambda i: (0, 0)),
                  pl.BlockSpec((4 * c_t, 1), lambda i: (0, 0)),
                  pl.BlockSpec((c_z, c_z), lambda i: (0, 0)),
                  pl.BlockSpec((1, c_z), lambda i: (0, 0))],
        out_specs=[pl.BlockSpec((4 * c_t, tc), lambda i: (0, i)),
                   pl.BlockSpec((tc, c_z), lambda i: (i, 0))],
        out_shape=(jax.ShapeDtypeStruct((4 * c_t, m), jnp.float32),
                   jax.ShapeDtypeStruct((m, c_z), jnp.float32)),
        compiler_params=_PARALLEL,
    )(z2, p["ln_in"]["g"].reshape(1, c_z), p["ln_in"]["b"].reshape(1, c_z),
      p["proj"]["wt"], p["proj"]["b"].reshape(4 * c_t, 1),
      p["g"]["w"], p["g"]["b"].reshape(1, c_z))

    # (2) per-channel triangle contraction, CB channels batched per grid step
    p4 = proj_cf.reshape(4, c_t, n, n)                      # contiguous (free) reshape
    cb = c_t // 2 if c_t % 2 == 0 else c_t

    def sec_spec(sec):
        return pl.BlockSpec((1, cb, n, n), lambda i, sec=sec: (sec, i, 0, 0))

    t_cf = pl.pallas_call(
        functools.partial(_tri_mult_kernel, incoming=incoming),
        grid=(c_t // cb,),
        in_specs=[sec_spec(0), sec_spec(1), sec_spec(2), sec_spec(3)],
        out_specs=pl.BlockSpec((cb, n, n), lambda i: (i, 0, 0)),
        out_shape=jax.ShapeDtypeStruct((c_t, n, n), jnp.float32),
        compiler_params=_PARALLEL,
    )(p4, p4, p4, p4)

    # (3) fused output LayerNorm + projection + gate + residual
    t2 = t_cf.reshape(c_t, m)                               # contiguous (free) reshape
    out = pl.pallas_call(
        _tri_out_kernel,
        grid=(m // tc,),
        in_specs=[pl.BlockSpec((c_t, tc), lambda i: (0, i)),
                  pl.BlockSpec((c_t, 1), lambda i: (0, 0)),
                  pl.BlockSpec((c_t, 1), lambda i: (0, 0)),
                  pl.BlockSpec((c_t, c_z), lambda i: (0, 0)),
                  pl.BlockSpec((1, c_z), lambda i: (0, 0)),
                  pl.BlockSpec((tc, c_z), lambda i: (i, 0)),
                  pl.BlockSpec((tc, c_z), lambda i: (i, 0))],
        out_specs=pl.BlockSpec((tc, c_z), lambda i: (i, 0)),
        out_shape=jax.ShapeDtypeStruct((m, c_z), jnp.float32),
        compiler_params=_PARALLEL,
    )(t2, p["ln_out"]["g"].reshape(c_t, 1), p["ln_out"]["b"].reshape(c_t, 1),
      p["z"]["w"], p["z"]["b"].reshape(1, c_z), gate, z2)
    return out.reshape(n, n, c_z)


# ----------------------------- triangle attention ----------------------------

def triangle_attention(z, p, ending):
    """z + TriangleAttention(z) (starting or ending node, residual folded in)."""
    zz = jnp.transpose(z, (1, 0, 2)) if ending else z
    bias = ln_linear(zz, p["ln"], p["bias"])                 # (N, N, H), LN fused
    bias = jnp.transpose(bias, (2, 0, 1))                    # (H, N, N), un-broadcast
    out = fused_gated_attention(zz, bias, p["ln"], p["qkvg"], p["o"],
                                N_HEAD_TRI, C_HID_TRI)
    return jnp.transpose(out, (1, 0, 2)) if ending else out


# ------------------------------ Evoformer stack ------------------------------

def evoformer_block(m, z, p):
    # DropoutRowwise / DropoutColumnwise are identity in eval mode.
    m = msa_row_attention_with_pair_bias(m, z, p["msa_att_row"])
    m = msa_column_attention(m, p["msa_att_col"])
    m = transition(m, p["msa_transition"])
    z = outer_product_mean(m, z, p["opm"])
    core = p["core"]
    z = triangle_multiplication(z, core["tri_mul_out"], incoming=False)
    z = triangle_multiplication(z, core["tri_mul_in"], incoming=True)
    z = triangle_attention(z, core["tri_att_start"], ending=False)
    z = triangle_attention(z, core["tri_att_end"], ending=True)
    z = transition(z, core["pair_transition"])
    return m, z


def evoformer_stack(m, z, params):
    for p in params["blocks"]:
        m, z = evoformer_block(m, z, p)
    s = linear_plain(m[0], params["linear_s"])               # self.linear(m[..., 0, :, :])
    return m, z, s


# ------------------------- deterministic parameters --------------------------

def init_params(key):
    keys = iter(jax.random.split(key, 256))

    def lin(d_in, d_out):
        return {"w": 0.02 * jax.random.normal(next(keys), (d_in, d_out), jnp.float32),
                "b": jnp.zeros((d_out,), jnp.float32)}

    def lin_t(d_in, d_out):
        # weight stored transposed: kernels emit channel-major output via an NT matmul
        return {"wt": 0.02 * jax.random.normal(next(keys), (d_out, d_in), jnp.float32),
                "b": jnp.zeros((d_out,), jnp.float32)}

    def ln(d):
        return {"g": jnp.ones((d,), jnp.float32), "b": jnp.zeros((d,), jnp.float32)}

    def mha(c_in, c, h):
        # q|k|v|g projections concatenated along the output dim (head-contiguous)
        return {"qkvg": lin(c_in, 4 * h * c), "o": lin(h * c, c_in)}

    def tri_mul():
        return {"ln_in": ln(C_Z), "proj": lin_t(C_Z, 4 * C_TRI_MUL), "g": lin(C_Z, C_Z),
                "ln_out": ln(C_TRI_MUL), "z": lin(C_TRI_MUL, C_Z)}

    def tri_att():
        return {"ln": ln(C_Z), "bias": lin(C_Z, N_HEAD_TRI),
                **mha(C_Z, C_HID_TRI, N_HEAD_TRI)}

    def opm():
        return {"ln": ln(C_M), "l1": lin(C_M, C_OPM), "l2": lin(C_M, C_OPM),
                "out": lin(C_OPM * C_OPM, C_Z)}

    def block():
        return {
            "msa_att_row": {"ln_m": ln(C_M), "ln_z": ln(C_Z),
                            "bias": lin(C_Z, N_HEAD_MSA),
                            **mha(C_M, C_HID_MSA, N_HEAD_MSA)},
            "msa_att_col": {"ln": ln(C_M), **mha(C_M, C_HID_MSA, N_HEAD_MSA)},
            "msa_transition": {"ln": ln(C_M), "l1": lin(C_M, TRANSITION_N * C_M),
                               "l2": lin(TRANSITION_N * C_M, C_M)},
            "opm": opm(),
            "core": {"tri_mul_out": tri_mul(), "tri_mul_in": tri_mul(),
                     "tri_att_start": tri_att(), "tri_att_end": tri_att(),
                     "pair_transition": {"ln": ln(C_Z), "l1": lin(C_Z, TRANSITION_N * C_Z),
                                         "l2": lin(TRANSITION_N * C_Z, C_Z)}},
        }

    return {"blocks": [block() for _ in range(NUM_BLOCKS)], "linear_s": lin(C_M, C_S)}


if __name__ == "__main__":
    key = jax.random.PRNGKey(0)
    k_p, k_m, k_z = jax.random.split(key, 3)
    params = init_params(k_p)
    m = jax.random.normal(k_m, (N_SEQ, N_RES, C_M), jnp.float32)
    z = jax.random.normal(k_z, (N_RES, N_RES, C_Z), jnp.float32)

    m_out, z_out, s_out = evoformer_stack(m, z, params)
    jax.block_until_ready((m_out, z_out, s_out))

    assert m_out.shape == (N_SEQ, N_RES, C_M)
    assert z_out.shape == (N_RES, N_RES, C_Z)
    assert s_out.shape == (N_RES, C_S)
    assert bool(jnp.all(jnp.isfinite(m_out))
                & jnp.all(jnp.isfinite(z_out))
                & jnp.all(jnp.isfinite(s_out)))
    print("KERNEL_OK")
</pallas_src>

<mosaic_0001>
module attributes {stable_mosaic.version = 11 : i64} {
  func.func @_ln_linear_kernel(%arg0: i32, %arg1: memref<16x8xf32, #tpu.memory_space<vmem>>, %arg2: memref<1x8xf32, #tpu.memory_space<vmem>>, %arg3: memref<1x8xf32, #tpu.memory_space<vmem>>, %arg4: memref<8x2xf32, #tpu.memory_space<vmem>>, %arg5: memref<1x2xf32, #tpu.memory_space<vmem>>, %arg6: memref<16x2xf32, #tpu.memory_space<vmem>>) attributes {dimension_semantics = [#tpu.dimension_semantics<parallel>], iteration_bounds = array<i64: 4>, scalar_prefetch = 0 : i64, scratch_operands = 0 : i64, tpu.core_type = #tpu.core_type<tc>, window_params = [{transform_indices = @transform_0, window_bounds = array<i64: 16, 8>}, {pipeline_mode = #tpu.pipeline_mode<synchronous>, transform_indices = @transform_1, window_bounds = array<i64: 1, 8>}, {pipeline_mode = #tpu.pipeline_mode<synchronous>, transform_indices = @transform_2, window_bounds = array<i64: 1, 8>}, {pipeline_mode = #tpu.pipeline_mode<synchronous>, transform_indices = @transform_3, window_bounds = array<i64: 8, 2>}, {pipeline_mode = #tpu.pipeline_mode<synchronous>, transform_indices = @transform_4, window_bounds = array<i64: 1, 2>}, {transform_indices = @transform_5, window_bounds = array<i64: 16, 2>}]} {
    %c0 = arith.constant 0 : index
    %c0_0 = arith.constant 0 : index
    %0 = vector.load %arg1[%c0, %c0_0] : memref<16x8xf32, #tpu.memory_space<vmem>>, vector<16x8xf32>
    %c0_1 = arith.constant 0 : index
    %c0_2 = arith.constant 0 : index
    %1 = vector.load %arg2[%c0_1, %c0_2] : memref<1x8xf32, #tpu.memory_space<vmem>>, vector<1x8xf32>
    %c0_3 = arith.constant 0 : index
    %c0_4 = arith.constant 0 : index
    %2 = vector.load %arg3[%c0_3, %c0_4] : memref<1x8xf32, #tpu.memory_space<vmem>>, vector<1x8xf32>
    %cst = arith.constant dense<0.000000e+00> : vector<16xf32>
    %3 = vector.multi_reduction <add>, %0, %cst [1] : vector<16x8xf32> to vector<16xf32>
    %4 = vector.shape_cast %3 : vector<16xf32> to vector<16x1xf32>
    %cst_5 = arith.constant 8.000000e+00 : f32
    %5 = vector.broadcast %cst_5 : f32 to vector<16x1xf32>
    %6 = arith.divf %4, %5 : vector<16x1xf32>
    %7 = vector.broadcast %6 : vector<16x1xf32> to vector<16x8xf32>
    %8 = arith.subf %0, %7 : vector<16x8xf32>
    %9 = arith.mulf %8, %8 : vector<16x8xf32>
    %cst_6 = arith.constant dense<0.000000e+00> : vector<16xf32>
    %10 = vector.multi_reduction <add>, %9, %cst_6 [1] : vector<16x8xf32> to vector<16xf32>
    %11 = vector.shape_cast %10 : vector<16xf32> to vector<16x1xf32>
    %cst_7 = arith.constant 8.000000e+00 : f32
    %12 = vector.broadcast %cst_7 : f32 to vector<16x1xf32>
    %13 = arith.divf %11, %12 : vector<16x1xf32>
    %14 = vector.broadcast %6 : vector<16x1xf32> to vector<16x8xf32>
    %15 = arith.subf %0, %14 : vector<16x8xf32>
    %cst_8 = arith.constant 9.99999974E-6 : f32
    %16 = vector.broadcast %cst_8 : f32 to vector<16x1xf32>
    %17 = arith.addf %13, %16 : vector<16x1xf32>
    %18 = math.rsqrt %17 : vector<16x1xf32>
    %19 = vector.broadcast %18 : vector<16x1xf32> to vector<16x8xf32>
    %20 = arith.mulf %15, %19 : vector<16x8xf32>
    %21 = vector.broadcast %1 : vector<1x8xf32> to vector<16x8xf32>
    %22 = arith.mulf %20, %21 : vector<16x8xf32>
    %23 = vector.broadcast %2 : vector<1x8xf32> to vector<16x8xf32>
    %24 = arith.addf %22, %23 : vector<16x8xf32>
    %c0_9 = arith.constant 0 : index
    %c0_10 = arith.constant 0 : index
    %25 = vector.load %arg4[%c0_9, %c0_10] : memref<8x2xf32, #tpu.memory_space<vmem>>, vector<8x2xf32>
    %cst_11 = arith.constant dense<0.000000e+00> : vector<16x2xf32>
    %26 = tpu.matmul %24, %25, %cst_11 {dimension_numbers = #tpu.dot_dimension_numbers<[1], [0], [0], [1], [0, 0, 1, 1], [], []>} : vector<16x8xf32>, vector<8x2xf32>, vector<16x2xf32> -> vector<16x2xf32>
    %c0_12 = arith.constant 0 : index
    %c0_13 = arith.constant 0 : index
    %27 = vector.load %arg5[%c0_12, %c0_13] : memref<1x2xf32, #tpu.memory_space<vmem>>, vector<1x2xf32>
    %28 = vector.broadcast %27 : vector<1x2xf32> to vector<16x2xf32>
    %29 = arith.addf %26, %28 : vector<16x2xf32>
    %c0_14 = arith.constant 0 : index
    %c0_15 = arith.constant 0 : index
    %30 = vector.load %arg6[%c0_14, %c0_15] : memref<16x2xf32, #tpu.memory_space<vmem>>, vector<16x2xf32>
    tpu.vector_store %arg6[%c0_14, %c0_15], %29 {strides = array<i32>} : memref<16x2xf32, #tpu.memory_space<vmem>>, vector<16x2xf32>,
    return
  }
  func.func @transform_0(%arg0: i32) -> (i32, i32) {
    %c0_i32 = arith.constant 0 : i32
    %c0_i32_0 = arith.constant 0 : i32
    return %arg0, %c0_i32 : i32, i32
  }
  func.func @transform_1(%arg0: i32) -> (i32, i32) {
    %c0_i32 = arith.constant 0 : i32
    %c0_i32_0 = arith.constant 0 : i32
    %c0_i32_1 = arith.constant 0 : i32
    return %c0_i32, %c0_i32_0 : i32, i32
  }
  func.func @transform_2(%arg0: i32) -> (i32, i32) {
    %c0_i32 = arith.constant 0 : i32
    %c0_i32_0 = arith.constant 0 : i32
    %c0_i32_1 = arith.constant 0 : i32
    return %c0_i32, %c0_i32_0 : i32, i32
  }
  func.func @transform_3(%arg0: i32) -> (i32, i32) {
    %c0_i32 = arith.constant 0 : i32
    %c0_i32_0 = arith.constant 0 : i32
    %c0_i32_1 = arith.constant 0 : i32
    return %c0_i32, %c0_i32_0 : i32, i32
  }
  func.func @transform_4(%arg0: i32) -> (i32, i32) {
    %c0_i32 = arith.constant 0 : i32
    %c0_i32_0 = arith.constant 0 : i32
    %c0_i32_1 = arith.constant 0 : i32
    return %c0_i32, %c0_i32_0 : i32, i32
  }
  func.func @transform_5(%arg0: i32) -> (i32, i32) {
    %c0_i32 = arith.constant 0 : i32
    %c0_i32_0 = arith.constant 0 : i32
    return %arg0, %c0_i32 : i32, i32
  }
}

</mosaic_0001>

<llo_original>
// kernel: tpu_custom_call.1
$region0: #{tpu_custom_call.1}
  #allocation0 [shape = 'u32[]', space=smem, size = 0x4, offset = 0x4, fixed_abs, tag = 'smem constant byte address 0x4 - core index']
  #allocation1 [shape = 'u32[144,128]{1,0:T(1,128)}', space=vmem, size = 0x12000, scoped, tag = 'internal scratch']
  %s0 = inlined_call_operand.vmem [shape: f32[64,8], index: 0, kind: input, shape index: {}]
  %s1 = inlined_call_operand.vmem [shape: f32[1,8], index: 1, kind: input, shape index: {}]
  %s2 = inlined_call_operand.vmem [shape: f32[1,8], index: 2, kind: input, shape index: {}]
  %s3 = inlined_call_operand.vmem [shape: f32[8,2], index: 3, kind: input, shape index: {}]
  %s4 = inlined_call_operand.vmem [shape: f32[1,2], index: 4, kind: input, shape index: {}]
  %s5 = inlined_call_operand.vmem [shape: f32[64,2], index: 5, kind: output, shape index: {}]
  %s6 = sld [smem:[#allocation0]]
  $region53: #{tpu_custom_call.1} parent=0
    _
  %s8 = ssub.s32 1, %s6
  %s9 = scalar_select 0, %s8, %s6
  loop: start=0, step=1, limit=6
  $region2: #{tpu_custom_call.1} parent=0 // loop_pre_header
    _
  $region3: #{tpu_custom_call.1} parent=0 // loop_header
    %s11 = sphi 0, %s15
    %p12 = scmp.ge.s32.totalorder %s11, 6
    %s21 = sphi 0, %s23
    %s24 = sphi 0, %s21
    %s25 = sphi 0, %s24
    %s41 = sphi 0, %s25
    %s45 = sphi 0, %s45
    %s47 = sphi 0, %s45
    %s48 = sphi 0, %s47
    %s62 = sphi 0, %s48
    %s66 = sphi 0, %s66
    %s68 = sphi 0, %s66
    %s69 = sphi 0, %s68
    %s83 = sphi 0, %s69
    %s87 = sphi 0, %s87
    %s89 = sphi 0, %s87
    %s90 = sphi 0, %s89
    %s104 = sphi 0, %s90
    %s108 = sphi 0, %s108
    %s110 = sphi 0, %s108
    %s111 = sphi 0, %s110
    %s125 = sphi 0, %s111
    %s131 = sphi 0, %s133
    %s134 = sphi 0, %s131
    %s135 = sphi 0, %s134
    %s151 = sphi 0, %s135
  $region4: #{tpu_custom_call.1} parent=0 // loop_header_branch
    %14 = sbr.rel (%p12) target = $region8
  $region5: #{tpu_custom_call.1} parent=0 // loop_body
    %s16 = ssub.s32 %s11, 1
    %s17 = ssub.s32 %s11, 2
    %s18 = sadd.s32 %s11, 1
    %s19 = ssub.s32 %s11, %s18
    %p20 = scmp.eq.s32.totalorder %s19, 0
    %s22 = sadd.s32 %s21, 1
    %s23 = scalar_select %p20, %s21, %s22
    %p26 = pneg %p20
    %p27 = scmp.eq.s32.totalorder %s11, 3
    %p28 = por %p26, %p27
    %p29 = scmp.ne.s32.totalorder %s21, %s24
    %p30 = scmp.eq.s32.totalorder %s11, 0
    %p31 = por %p29, %p30
    %p32 = scmp.ne.s32.totalorder %s21, %s24
    %p33 = scmp.eq.s32.totalorder %s16, 3
    %p34 = por %p32, %p33
    %p35 = scmp.ne.s32.totalorder %s24, %s25
    %p36 = scmp.eq.s32.totalorder %s16, 0
    %p37 = por %p35, %p36
    %p38 = scmp.ne.s32.totalorder %s24, %s25
    %p39 = scmp.eq.s32.totalorder %s17, 3
    %p40 = por %p38, %p39
    %p42 = scmp.ne.s32.totalorder %s25, %s41
    %p43 = scmp.eq.s32.totalorder %s17, 0
    %p44 = por %p42, %p43
    %s46 = sadd.s32 %s45, 1
    %p49 = scmp.eq.s32.totalorder %s11, 3
    %p50 = scmp.ne.s32.totalorder %s45, %s47
    %p51 = scmp.eq.s32.totalorder %s11, 0
    %p52 = por %p50, %p51
    %p53 = scmp.ne.s32.totalorder %s45, %s47
    %p54 = scmp.eq.s32.totalorder %s16, 3
    %p55 = por %p53, %p54
    %p56 = scmp.ne.s32.totalorder %s47, %s48
    %p57 = scmp.eq.s32.totalorder %s16, 0
    %p58 = por %p56, %p57
    %p59 = scmp.ne.s32.totalorder %s47, %s48
    %p60 = scmp.eq.s32.totalorder %s17, 3
    %p61 = por %p59, %p60
    %p63 = scmp.ne.s32.totalorder %s48, %s62
    %p64 = scmp.eq.s32.totalorder %s17, 0
    %p65 = por %p63, %p64
    %s67 = sadd.s32 %s66, 1
    %p70 = scmp.eq.s32.totalorder %s11, 3
    %p71 = scmp.ne.s32.totalorder %s66, %s68
    %p72 = scmp.eq.s32.totalorder %s11, 0
    %p73 = por %p71, %p72
    %p74 = scmp.ne.s32.totalorder %s66, %s68
    %p75 = scmp.eq.s32.totalorder %s16, 3
    %p76 = por %p74, %p75
    %p77 = scmp.ne.s32.totalorder %s68, %s69
    %p78 = scmp.eq.s32.totalorder %s16, 0
    %p79 = por %p77, %p78
    %p80 = scmp.ne.s32.totalorder %s68, %s69
    %p81 = scmp.eq.s32.totalorder %s17, 3
    %p82 = por %p80, %p81
    %p84 = scmp.ne.s32.totalorder %s69, %s83
    %p85 = scmp.eq.s32.totalorder %s17, 0
    %p86 = por %p84, %p85
    %s88 = sadd.s32 %s87, 1
    %p91 = scmp.eq.s32.totalorder %s11, 3
    %p92 = scmp.ne.s32.totalorder %s87, %s89
    %p93 = scmp.eq.s32.totalorder %s11, 0
    %p94 = por %p92, %p93
    %p95 = scmp.ne.s32.totalorder %s87, %s89
    %p96 = scmp.eq.s32.totalorder %s16, 3
    %p97 = por %p95, %p96
    %p98 = scmp.ne.s32.totalorder %s89, %s90
    %p99 = scmp.eq.s32.totalorder %s16, 0
    %p100 = por %p98, %p99
    %p101 = scmp.ne.s32.totalorder %s89, %s90
    %p102 = scmp.eq.s32.totalorder %s17, 3
    %p103 = por %p101, %p102
    %p105 = scmp.ne.s32.totalorder %s90, %s104
    %p106 = scmp.eq.s32.totalorder %s17, 0
    %p107 = por %p105, %p106
    %s109 = sadd.s32 %s108, 1
    %p112 = scmp.eq.s32.totalorder %s11, 3
    %p113 = scmp.ne.s32.totalorder %s108, %s110
    %p114 = scmp.eq.s32.totalorder %s11, 0
    %p115 = por %p113, %p114
    %p116 = scmp.ne.s32.totalorder %s108, %s110
    %p117 = scmp.eq.s32.totalorder %s16, 3
    %p118 = por %p116, %p117
    %p119 = scmp.ne.s32.totalorder %s110, %s111
    %p120 = scmp.eq.s32.totalorder %s16, 0
    %p121 = por %p119, %p120
    %p122 = scmp.ne.s32.totalorder %s110, %s111
    %p123 = scmp.eq.s32.totalorder %s17, 3
    %p124 = por %p122, %p123
    %p126 = scmp.ne.s32.totalorder %s111, %s125
    %p127 = scmp.eq.s32.totalorder %s17, 0
    %p128 = por %p126, %p127
    %s129 = ssub.s32 %s11, %s18
    %p130 = scmp.eq.s32.totalorder %s129, 0
    %s132 = sadd.s32 %s131, 1
    %s133 = scalar_select %p130, %s131, %s132
    %p136 = pneg %p130
    %p137 = scmp.eq.s32.totalorder %s11, 3
    %p138 = por %p136, %p137
    %p139 = scmp.ne.s32.totalorder %s131, %s134
    %p140 = scmp.eq.s32.totalorder %s11, 0
    %p141 = por %p139, %p140
    %p142 = scmp.ne.s32.totalorder %s131, %s134
    %p143 = scmp.eq.s32.totalorder %s16, 3
    %p144 = por %p142, %p143
    %p145 = scmp.ne.s32.totalorder %s134, %s135
    %p146 = scmp.eq.s32.totalorder %s16, 0
    %p147 = por %p145, %p146
    %p148 = scmp.ne.s32.totalorder %s134, %s135
    %p149 = scmp.eq.s32.totalorder %s17, 3
    %p150 = por %p148, %p149
    %p152 = scmp.ne.s32.totalorder %s135, %s151
    %p153 = scmp.eq.s32.totalorder %s17, 0
    %p154 = por %p152, %p153
    %p155 = scmp.le.s32.totalorder 1, %s11
    %p156 = scmp.lt.s32.totalorder %s11, 5
    %p157 = pnand %p155, %p156
    %p158 = pneg %p157
    // Predicated region
    $region9: #{tpu_custom_call.1} parent=5 // pred_check
      _
    $region10: #{tpu_custom_call.1} parent=5 // pred_check_branch
      %160 = sbr.rel (%p157) target = $region12
    $region11: #{tpu_custom_call.1} parent=5 // pred_region
      %s161 = ssub.s32 %s11, 1
      // Predicated region
      $region13: #{tpu_custom_call.1} parent=11 // pred_check
        %p162 = pneg %p58
      $region14: #{tpu_custom_call.1} parent=11 // pred_check_branch
        %164 = sbr.rel (%p162) target = $region16
      $region15: #{tpu_custom_call.1} parent=11 // pred_region
        _
      $region16: #{tpu_custom_call.1} parent=11 // pred_fallthru
        _
      // Predicated region
      $region17: #{tpu_custom_call.1} parent=11 // pred_check
        %p165 = pneg %p79
      $region18: #{tpu_custom_call.1} parent=11 // pred_check_branch
        %167 = sbr.rel (%p165) target = $region20
      $region19: #{tpu_custom_call.1} parent=11 // pred_region
        _
      $region20: #{tpu_custom_call.1} parent=11 // pred_fallthru
        _
      // Predicated region
      $region21: #{tpu_custom_call.1} parent=11 // pred_check
        %p168 = pneg %p100
      $region22: #{tpu_custom_call.1} parent=11 // pred_check_branch
        %170 = sbr.rel (%p168) target = $region24
      $region23: #{tpu_custom_call.1} parent=11 // pred_region
        _
      $region24: #{tpu_custom_call.1} parent=11 // pred_fallthru
        _
      // Predicated region
      $region25: #{tpu_custom_call.1} parent=11 // pred_check
        %p171 = pneg %p121
      $region26: #{tpu_custom_call.1} parent=11 // pred_check_branch
        %173 = sbr.rel (%p171) target = $region28
      $region27: #{tpu_custom_call.1} parent=11 // pred_region
        _
      $region28: #{tpu_custom_call.1} parent=11 // pred_fallthru
        _
    $region12: #{tpu_custom_call.1} parent=5 // pred_fallthru
      _
    %p174 = scmp.lt.s32.totalorder %s11, 4
    // Predicated region
    $region29: #{tpu_custom_call.1} parent=5 // pred_check
      %p175 = pneg %p174
    $region30: #{tpu_custom_call.1} parent=5 // pred_check_branch
      %177 = sbr.rel (%p175) target = $region32
    $region31: #{tpu_custom_call.1} parent=5 // pred_region
      // Predicated region
      $region33: #{tpu_custom_call.1} parent=31 // pred_check
        %p178 = pneg %p31
      $region34: #{tpu_custom_call.1} parent=31 // pred_check_branch
        %180 = sbr.rel (%p178) target = $region36
      $region35: #{tpu_custom_call.1} parent=31 // pred_region
        %s181 = smul.u32 2, %s11
        %p182 = scmp.lt.s32.totalorder %s181, 7
        %s183 = scalar_select %p182, %s181, 7
        %s184 = smul.addr %s183, 8
        %s185 = scalar_lea.vmem %s0, %s184
        %s186 = smul.u32 2, %s11
      $region36: #{tpu_custom_call.1} parent=31 // pred_fallthru
        _
    $region32: #{tpu_custom_call.1} parent=5 // pred_fallthru
      _
    %p187 = scmp.le.s32.totalorder 1, %s11
    %p188 = scmp.lt.s32.totalorder %s11, 5
    %p189 = pnand %p187, %p188
    %p190 = pneg %p189
    // Predicated region
    $region37: #{tpu_custom_call.1} parent=5 // pred_check
      _
    $region38: #{tpu_custom_call.1} parent=5 // pred_check_branch
      %192 = sbr.rel (%p189) target = $region40
    $region39: #{tpu_custom_call.1} parent=5 // pred_region
      %s193 = ssub.s32 %s11, 1
      %s194 = smul.u32 2, %s16
      %p195 = scmp.lt.s32.totalorder %s194, 7
      %s196 = scalar_select %p195, %s194, 7
      %s197 = smul.addr %s196, 8
      %s198 = scalar_lea.vmem %s0, %s197
      %p199 = pneg %p37
      %p200 = pneg %p34
      %p201 = pneg %p58
      %p202 = pneg %p55
      %p203 = pneg %p79
      %p204 = pneg %p76
      %p205 = pneg %p100
      %p206 = pneg %p97
      %p207 = pneg %p121
      %p208 = pneg %p118
      %p209 = pneg %p147
      %p210 = pneg %p144
      %s211 = smul.u32 2, %s16
      %p212 = scmp.lt.s32.totalorder %s211, 7
      %s213 = scalar_select %p212, %s211, 7
      %s214 = smul.addr %s213, 8
      %s215 = scalar_lea.vmem %s5, %s214
      %s216 = smul.u32 2, %s16
      %p217 = scmp.lt.s32.totalorder %s216, 7
      %s218 = scalar_select %p217, %s216, 7
      %s219 = smul.addr %s218, 8
      %s220 = scalar_lea.vmem %s0, %s219
      %s221 = smul.u32 2, %s16
      %s222 = smul.u32 2, %s16
      %p223 = scmp.lt.s32.totalorder %s222, 7
      %s224 = scalar_select %p223, %s222, 7
      %s225 = smul.addr %s224, 8
      %s226 = scalar_lea.vmem %s5, %s225
      %s227 = smul.u32 2, %s16
      %v228 = vld [vmem:[%s220] sm:$0xff]
      %v229 = vld [vmem:[%s220 + $0x8] sm:$0xff]
      %v230 = vld [vmem:[%s1] sm:$0x1]
      %v231 = vld [vmem:[%s2] sm:$0x1]
      %vm232 = vcmask 64512
      %v233 = vsel %vm232, %v228, 0.0
      %234 = vadd.xlane.f32.xlu0 %v233
      %v235 = vpop.xlane.xlu0 %234
      %v236 = vsel %vm232, %v229, 0.0
      %237 = vadd.xlane.f32.xlu0 %v236
      %v238 = vpop.xlane.xlu0 %237
      %v239 = vrcp.pop 8.0
      %v240 = vmul.f32 %v235, %v239
      %v241 = vmul.f32 %v238, %v239
      %v242 = vsub.f32 %v228, %v240
      %v243 = vsub.f32 %v229, %v241
      %v244 = vmul.f32 %v242, %v242
      %v245 = vmul.f32 %v243, %v243
      %v246 = vsel %vm232, %v244, 0.0
      %247 = vadd.xlane.f32.xlu0 %v246
      %v248 = vpop.xlane.xlu0 %247
      %v249 = vsel %vm232, %v245, 0.0
      %250 = vadd.xlane.f32.xlu0 %v249
      %v251 = vpop.xlane.xlu0 %250
      %v252 = vmul.f32 %v248, %v239
      %v253 = vmul.f32 %v251, %v239
      %v254 = vadd.f32 %v252, 1e-05
      %v255 = vadd.f32 %v253, 1e-05
      %v256 = vrsqrt.pop %v254
      %v257 = vrsqrt.pop %v255
      %v258 = vmul.f32 %v242, %v256
      %v259 = vmul.f32 %v243, %v257
      %v261 = vlaneseq
      %v262 = vshrl.u32 %v261, 7
      %v263 = vsub.s32 0, %v262
      %v264 = vrot.slane %v230, %v263
      %v266 = vmul.f32 %v258, %v264
      %v267 = vmul.f32 %v259, %v264
      %v269 = vlaneseq
      %v270 = vshrl.u32 %v269, 7
      %v271 = vsub.s32 0, %v270
      %v272 = vrot.slane %v231, %v271
      %v274 = vadd.f32 %v266, %v272
      %v275 = vadd.f32 %v267, %v272
      %v276 = vld [vmem:[%s3] sm:$0xff]
      %v277 = vld [vmem:[%s4] sm:$0x1]
      %v279 = vlaneseq
      %v280 = vshrl.u32 %v279, 7
      %v281 = vsub.s32 0, %v280
      %v282 = vrot.slane %v277, %v281
      %v285 = vsel %vm232, %v274, 0
      %v288 = vsel %vm232, %v275, 0
      %290 = vmatprep.subr.mxu0 0.0
      %291 = vmatpush1.msra.mxu0 %v276
      %292 = vmatprep.subr.mxu0 0.0
      %293 = vmatpush1.msra.mxu0 0.0
      %294 = vmatprep.subr.mxu0 0.0
      %295 = vmatpush1.msra.mxu0 0.0
      %296 = vmatprep.subr.mxu0 0.0
      %297 = vmatpush1.msra.mxu0 0.0
      %298 = vmatprep.subr.mxu0 0.0
      %299 = vmatpush1.msra.mxu0 0.0
      %300 = vmatprep.subr.mxu0 0.0
      %301 = vmatpush1.msra.mxu0 0.0
      %302 = vmatprep.subr.mxu0 0.0
      %303 = vmatpush1.msra.mxu0 0.0
      %304 = vmatprep.subr.mxu0 0.0
      %305 = vmatpush1.msra.mxu0 0.0
      %306 = vmatprep.subr.mxu0 0.0
      %307 = vmatpush1.msra.mxu0 0.0
      %308 = vmatprep.subr.mxu0 0.0
      %309 = vmatpush1.msra.mxu0 0.0
      %310 = vmatprep.subr.mxu0 0.0
      %311 = vmatpush1.msra.mxu0 0.0
      %312 = vmatprep.subr.mxu0 0.0
      %313 = vmatpush1.msra.mxu0 0.0
      %314 = vmatprep.subr.mxu0 0.0
      %315 = vmatpush1.msra.mxu0 0.0
      %316 = vmatprep.subr.mxu0 0.0
      %317 = vmatpush1.msra.mxu0 0.0
      %318 = vmatprep.subr.mxu0 0.0
      %319 = vmatpush1.msra.mxu0 0.0
      %320 = vmatprep.subr.mxu0 0.0
      %321 = vmatpush1.msra.mxu0 0.0
      %322 = vmatprep.subr.mxu0 0.0
      %323 = vmatpush1.msra.mxu0 0.0
      %324 = vmatprep.subr.mxu0 0.0
      %325 = vmatpush1.msra.mxu0 0.0
      %326 = vmatprep.subr.mxu0 0.0
      %327 = vmatpush1.msra.mxu0 0.0
      %328 = vmatprep.subr.mxu0 0.0
      %329 = vmatpush1.msra.mxu0 0.0
      %330 = vmatprep.subr.mxu0 0.0
      %331 = vmatpush1.msra.mxu0 0.0
      %332 = vmatprep.subr.mxu0 0.0
      %333 = vmatpush1.msra.mxu0 0.0
      %334 = vmatprep.subr.mxu0 0.0
      %335 = vmatpush1.msra.mxu0 0.0
      %336 = vmatprep.subr.mxu0 0.0
      %337 = vmatpush1.msra.mxu0 0.0
      %338 = vmatprep.subr.mxu0 0.0
      %339 = vmatpush1.msra.mxu0 0.0
      %340 = vmatprep.subr.mxu0 0.0
      %341 = vmatpush1.msra.mxu0 0.0
      %342 = vmatprep.subr.mxu0 0.0
      %343 = vmatpush1.msra.mxu0 0.0
      %344 = vmatprep.subr.mxu0 0.0
      %345 = vmatpush1.msra.mxu0 0.0
      %346 = vmatprep.subr.mxu0 0.0
      %347 = vmatpush1.msra.mxu0 0.0
      %348 = vmatprep.subr.mxu0 0.0
      %349 = vmatpush1.msra.mxu0 0.0
      %350 = vmatprep.subr.mxu0 0.0
      %351 = vmatpush1.msra.mxu0 0.0
      %352 = vmatprep.subr.mxu0 0.0
      %353 = vmatpush1.msra.mxu0 0.0
      %354 = vmatprep.mubr.f32.mxu0 0.0
      %355 = vmatmul.mubr.f32.gmra.mrb[0].mxu0 %v285
      %v356 = vpop.f32.mrb[0].mxu0
      %v357 = vadd.f32 %v282, %v356
      %v358 = vpop.f32.mrb[0].mxu0
      %359 = vmatprep.mubr.f32.mxu0 0.0
      %360 = vmatmul.mubr.f32.gmra.mrb[0].mxu0 %v288
      %v361 = vpop.f32.mrb[0].mxu0
      %v362 = vadd.f32 %v282, %v361
      %v363 = vpop.f32.mrb[0].mxu0
      %364 = vdwg.mxu0
      %vm365 = vcmask 15360
      %366 = vst.msk [vmem:[%s226] sm:$0xff] %vm365, %v357
      %367 = vst.msk [vmem:[%s226 + $0x8] sm:$0xff] %vm365, %v362
      %s368 = smul.u32 2, %s16
      %p369 = scmp.lt.s32.totalorder %s368, 7
      %s370 = scalar_select %p369, %s368, 7
      %s371 = smul.addr %s370, 8
      %s372 = scalar_lea.vmem %s5, %s371
      // Predicated region
      $region41: #{tpu_custom_call.1} parent=39 // pred_check
        %p373 = pneg %p144
      $region42: #{tpu_custom_call.1} parent=39 // pred_check_branch
        %375 = sbr.rel (%p373) target = $region44
      $region43: #{tpu_custom_call.1} parent=39 // pred_region
        %s376 = smul.u32 2, %s16
      $region44: #{tpu_custom_call.1} parent=39 // pred_fallthru
        _
    $region40: #{tpu_custom_call.1} parent=5 // pred_fallthru
      _
    %p377 = scmp.le.s32.totalorder 2, %s11
    // Predicated region
    $region45: #{tpu_custom_call.1} parent=5 // pred_check
      %p378 = pneg %p377
    $region46: #{tpu_custom_call.1} parent=5 // pred_check_branch
      %380 = sbr.rel (%p378) target = $region48
    $region47: #{tpu_custom_call.1} parent=5 // pred_region
      %s381 = ssub.s32 %s11, 2
      // Predicated region
      $region49: #{tpu_custom_call.1} parent=47 // pred_check
        %p382 = pneg %p150
      $region50: #{tpu_custom_call.1} parent=47 // pred_check_branch
        %384 = sbr.rel (%p382) target = $region52
      $region51: #{tpu_custom_call.1} parent=47 // pred_region
        %s385 = smul.u32 2, %s17
        %p386 = scmp.lt.s32.totalorder %s385, 7
        %s387 = scalar_select %p386, %s385, 7
        %s388 = smul.addr %s387, 8
        %s389 = scalar_lea.vmem %s5, %s388
      $region52: #{tpu_custom_call.1} parent=47 // pred_fallthru
        _
    $region48: #{tpu_custom_call.1} parent=5 // pred_fallthru
      _
  $region6: #{tpu_custom_call.1} parent=0 // loop_footer
    %s15 = sadd.s32 1, %s11
  $region7: #{tpu_custom_call.1} parent=0 // loop_footer_branch
    %10 = sbr.rel target = $region3
  $region8: #{tpu_custom_call.1} parent=0 // loop_exit
    _

</llo_original>
